<compile_context>
chip_gen: v7x
topology: tpu7x:2x2x1
jax: 0.10.0
libtpu: 0.0.40
codegen_flags: <defaults>
</compile_context>

<pallas_src>
import functools

import numpy as np
import jax
import jax.numpy as jnp
from jax.experimental import pallas as pl
from jax.experimental.pallas import tpu as pltpu


_NATIVE_DTYPES = (np.dtype(jnp.float32), np.dtype(jnp.bfloat16))


def _round_up(x: int, m: int) -> int:
    return -(-x // m) * m


def _cdiv(a: int, b: int) -> int:
    return -(-a // b)


def _smooth_cosine_cutoff_kernel(d_ref, o_ref, *, cs, c, inv_scale):
    # cs, c, inv_scale are compile-time f32 constants (no SMEM operands).
    d = d_ref[...].astype(jnp.float32)                  # in-vreg upcast (free)
    phase = (jnp.clip(d, cs, c) - cs) * inv_scale       # VPU
    num = 0.5 * (jnp.cos(phase) + 1.0)                  # cos + VPU
    out = num * pl.reciprocal(d, approx=False)          # EUP reciprocal + mul
    o_ref[...] = out.astype(o_ref.dtype)                # downcast on store


def _jnp_forward(d, cs, c, inv_scale):
    df = d.astype(jnp.float32)
    phase = (jnp.clip(df, cs, c) - cs) * inv_scale
    return (0.5 * (jnp.cos(phase) + 1.0) / df).astype(d.dtype)


def smooth_cosine_cutoff(distances, cutoff_smooth=2.8, cutoff=3.0, *,
                         target_block_bytes=2 << 20,
                         min_pallas_elements=2048):
    """Elementwise smooth cosine cutoff for any shape; f32/bf16 run natively.

    NOTE: like the PyTorch reference, d == 0 produces inf (1/d is unguarded).
    """
    distances = jnp.asarray(distances)
    orig_shape = distances.shape
    orig_dtype = distances.dtype

    cs = np.float32(cutoff_smooth)
    c = np.float32(cutoff)
    inv_scale = np.float32(np.pi / (float(cutoff) - float(cutoff_smooth)))

    n = int(distances.size)
    if n == 0:
        return distances

    # dtypes the kernel loads/stores natively (casts happen in-vreg).
    if orig_dtype in _NATIVE_DTYPES:
        work = distances
    else:
        # TODO(synk): f64/f16/int inputs round-trip through f32 in the wrapper.
        work = distances.astype(jnp.float32)

    # Tiny inputs: launch + wrapper overhead dwarfs the work; XLA fuses this.
    if n < min_pallas_elements:
        return _jnp_forward(work, cs, c, inv_scale).astype(orig_dtype)

    # ---- Build a lane-dense 2-D *view* (reshape only, never a copy). ----
    d2 = None
    for W in (2048, 1024, 512, 256, 128):
        if n % W == 0:
            d2 = work.reshape(n // W, W)
            break
    if d2 is None:
        # Flat size not 128-divisible: use the original trailing dim as a
        # full-extent lane dimension; the partial last row-block (if any) is
        # handled by Pallas (out-of-bounds lanes are never written back).
        if work.ndim >= 2:
            d2 = work.reshape(-1, orig_shape[-1])
        else:
            d2 = work.reshape(1, n)
        itemsize = np.dtype(d2.dtype).itemsize
        if d2.shape[1] * itemsize * 8 > target_block_bytes:
            # TODO(synk): very wide ragged rows would need a 2-D grid with a
            # masked lane tail; fall back to fused XLA elementwise (rare case).
            return _jnp_forward(work, cs, c, inv_scale).astype(orig_dtype)

    R, C = d2.shape
    itemsize = np.dtype(d2.dtype).itemsize
    sub = 8 if itemsize == 4 else 16          # sublane granularity (f32 / bf16)

    # Rows per block: ~target_block_bytes, but keep >=2 grid steps when the
    # row count permits so both v7x TensorCores (megacore) get work.
    budget_rows = max(sub, (target_block_bytes // (C * itemsize)) // sub * sub)
    half_rows = _round_up(_cdiv(R, 2), sub)
    br = min(budget_rows, half_rows)
    if br >= R:
        br = R                                 # single full-extent block
    grid = (_cdiv(R, br),)

    kernel = functools.partial(_smooth_cosine_cutoff_kernel,
                               cs=cs, c=c, inv_scale=inv_scale)

    out2 = pl.pallas_call(
        kernel,
        out_shape=jax.ShapeDtypeStruct((R, C), d2.dtype),
        grid_spec=pl.GridSpec(
            grid=grid,
            in_specs=[pl.BlockSpec((br, C), lambda i: (i, 0))],
            out_specs=pl.BlockSpec((br, C), lambda i: (i, 0)),
        ),
        compiler_params=pltpu.CompilerParams(
            dimension_semantics=("parallel",),
            vmem_limit_bytes=32 << 20),
        cost_estimate=pl.CostEstimate(
            flops=8 * n,
            transcendentals=2 * n,
            bytes_accessed=2 * n * itemsize),
    )(d2)

    return out2.reshape(orig_shape).astype(orig_dtype)


def _reference(distances, cutoff_smooth=2.8, cutoff=3.0):
    phase = (jnp.clip(distances, cutoff_smooth, cutoff) - cutoff_smooth) \
            / (cutoff - cutoff_smooth) * np.pi
    return 0.5 * (jnp.cos(phase) + 1.0) / distances


if __name__ == "__main__":
    key = jax.random.PRNGKey(0)
    k1, k2, k3 = jax.random.split(key, 3)

    # (num_atoms, num_neighbors) pairwise distances, strictly positive.
    d_small = jax.random.uniform(k1, (16, 256), jnp.float32, 0.5, 4.0)
    out = jax.block_until_ready(smooth_cosine_cutoff(d_small))
    np.testing.assert_allclose(np.asarray(out), np.asarray(_reference(d_small)),
                               rtol=1e-6, atol=1e-6)

    # Ragged size (37*1000 not a multiple of 128): full-extent-C blocks with a
    # partial last row block — no padding copies anywhere.
    d_ragged = jax.random.uniform(k2, (37, 1000), jnp.float32, 0.5, 4.0)
    out_r = jax.block_until_ready(smooth_cosine_cutoff(d_ragged))
    np.testing.assert_allclose(np.asarray(out_r),
                               np.asarray(_reference(d_ragged)),
                               rtol=1e-6, atol=1e-6)

    # bf16 path: loads/stores bf16 (half the HBM traffic), computes in f32.
    d_bf16 = jax.random.uniform(k3, (64, 512), jnp.float32, 0.5, 4.0)
    d_bf16 = d_bf16.astype(jnp.bfloat16)
    out_b = jax.block_until_ready(smooth_cosine_cutoff(d_bf16))
    ref_b = _reference(d_bf16.astype(jnp.float32)).astype(jnp.bfloat16)
    np.testing.assert_allclose(np.asarray(out_b, dtype=np.float32),
                               np.asarray(ref_b, dtype=np.float32),
                               rtol=2e-2, atol=2e-2)

    # Tiny input -> pure-jnp fallback path.
    d_tiny = jax.random.uniform(k1, (3, 5), jnp.float32, 0.5, 4.0)
    out_t = jax.block_until_ready(smooth_cosine_cutoff(d_tiny))
    np.testing.assert_allclose(np.asarray(out_t), np.asarray(_reference(d_tiny)),
                               rtol=1e-6, atol=1e-6)

    print("KERNEL_OK")
</pallas_src>

<mosaic_0001>
module attributes {stable_mosaic.version = 11 : i64} {
  func.func @_smooth_cosine_cutoff_kernel(%arg0: i32, %arg1: memref<2x2048xf32, #tpu.memory_space<vmem>>, %arg2: memref<2x2048xf32, #tpu.memory_space<vmem>>) attributes {dimension_semantics = [#tpu.dimension_semantics<parallel>], iteration_bounds = array<i64: 1>, scalar_prefetch = 0 : i64, scratch_operands = 0 : i64, tpu.core_type = #tpu.core_type<tc>, window_params = [{transform_indices = @transform_0, window_bounds = array<i64: 2, 2048>}, {transform_indices = @transform_1, window_bounds = array<i64: 2, 2048>}]} {
    %c0 = arith.constant 0 : index
    %c0_0 = arith.constant 0 : index
    %0 = vector.load %arg1[%c0, %c0_0] : memref<2x2048xf32, #tpu.memory_space<vmem>>, vector<2x2048xf32>
    %cst = arith.constant 2.800000e+00 : f32
    %cst_1 = arith.constant 3.000000e+00 : f32
    %1 = vector.broadcast %cst : f32 to vector<2x2048xf32>
    %2 = arith.maximumf %1, %0 : vector<2x2048xf32>
    %3 = vector.broadcast %cst_1 : f32 to vector<2x2048xf32>
    %4 = arith.minimumf %3, %2 : vector<2x2048xf32>
    %cst_2 = arith.constant 2.800000e+00 : f32
    %5 = vector.broadcast %cst_2 : f32 to vector<2x2048xf32>
    %6 = arith.subf %4, %5 : vector<2x2048xf32>
    %cst_3 = arith.constant 15.707963 : f32
    %7 = vector.broadcast %cst_3 : f32 to vector<2x2048xf32>
    %8 = arith.mulf %6, %7 : vector<2x2048xf32>
    %9 = math.cos %8 : vector<2x2048xf32>
    %cst_4 = arith.constant 1.000000e+00 : f32
    %10 = vector.broadcast %cst_4 : f32 to vector<2x2048xf32>
    %11 = arith.addf %9, %10 : vector<2x2048xf32>
    %cst_5 = arith.constant 5.000000e-01 : f32
    %12 = vector.broadcast %cst_5 : f32 to vector<2x2048xf32>
    %13 = arith.mulf %12, %11 : vector<2x2048xf32>
    %14 = tpu.reciprocal %0 : vector<2x2048xf32> -> vector<2x2048xf32>
    %15 = arith.mulf %13, %14 : vector<2x2048xf32>
    %c0_6 = arith.constant 0 : index
    %c0_7 = arith.constant 0 : index
    %16 = vector.load %arg2[%c0_6, %c0_7] : memref<2x2048xf32, #tpu.memory_space<vmem>>, vector<2x2048xf32>
    tpu.vector_store %arg2[%c0_6, %c0_7], %15 {strides = array<i32>} : memref<2x2048xf32, #tpu.memory_space<vmem>>, vector<2x2048xf32>,
    return
  }
  func.func @transform_0(%arg0: i32) -> (i32, i32) {
    %c0_i32 = arith.constant 0 : i32
    %c0_i32_0 = arith.constant 0 : i32
    return %arg0, %c0_i32 : i32, i32
  }
  func.func @transform_1(%arg0: i32) -> (i32, i32) {
    %c0_i32 = arith.constant 0 : i32
    %c0_i32_0 = arith.constant 0 : i32
    return %arg0, %c0_i32 : i32, i32
  }
}

</mosaic_0001>

<llo_original>
// kernel: tpu_custom_call.1
$region0: #{tpu_custom_call.1}
  #allocation0 [shape = 'u32[]', space=smem, size = 0x4, offset = 0x4, fixed_abs, tag = 'smem constant byte address 0x4 - core index']
  #allocation1 [shape = 'u32[144,128]{1,0:T(1,128)}', space=vmem, size = 0x12000, scoped, tag = 'internal scratch']
  %s0 = inlined_call_operand.hbm [shape: f32[2,2048], index: 0, kind: input, shape index: {}]
  %s1 = inlined_call_operand.hbm [shape: f32[2,2048], index: 1, kind: output, shape index: {}]
  %s2 = sld [smem:[#allocation0]]
  $region18: #{tpu_custom_call.1} parent=0
    _
  %s4 = ssub.s32 1, %s2
  %s5 = scalar_select 0, %s4, %s2
  $region1: #{tpu_custom_call.1} parent=0
    #allocation2 [shape = 'u8[16384]{0}', space=vmem, size = 0x4000, scoped, tag = 'input window, operand 0, single buffered']
    #allocation3 [shape = 's32[1]{0}', space=sflag, size = 0x4, scoped, tag = 'scoped memory for tpu_custom_call.1']
    #allocation4 [shape = 's32[1]{0}', space=sflag, size = 0x4, scoped, tag = 'scoped memory for tpu_custom_call.1']
    #allocation5 [shape = 'u8[16384]{0}', space=vmem, size = 0x4000, scoped, tag = 'output window, operand 0, single buffered']
    %6 = vsyncpa [#allocation3], 0
    %7 = vsyncpa [#allocation4], 0
    // Predicated region
    $region2: #{tpu_custom_call.1} parent=1 // pred_check
      _
    $region3: #{tpu_custom_call.1} parent=1 // pred_check_branch
      %9 = sbr.rel (0) target = $region5
    $region4: #{tpu_custom_call.1} parent=1 // pred_region
      %s11 = ssub.s32 512, 512
      %12 = vsyncadd [#allocation3], %s11
      %s14 = sshll.u32 [#allocation2], 4
      %s15 = int_to_ptr.vmem [resolvable:$true] %s14
      %17 = dma.hbm_to_vmem [thread:$0]  %s0, 512, %s15, [#allocation3]
    $region5: #{tpu_custom_call.1} parent=1 // pred_fallthru
      _
    // Predicated region
    $region6: #{tpu_custom_call.1} parent=1 // pred_check
      _
    $region7: #{tpu_custom_call.1} parent=1 // pred_check_branch
      %19 = sbr.rel (0) target = $region9
    $region8: #{tpu_custom_call.1} parent=1 // pred_region
      %20 = dma.done [#allocation3], 512
    $region9: #{tpu_custom_call.1} parent=1 // pred_fallthru
      _
    %v21 = vld [vmem:[#allocation2] sm:$0xff]
    %v22 = vld [vmem:[#allocation2 + $0x8] sm:$0xff]
    %v23 = vld [vmem:[#allocation2 + $0x10] sm:$0xff]
    %v24 = vld [vmem:[#allocation2 + $0x18] sm:$0xff]
    %v25 = vmax.f32 %v21, 2.8
    %v26 = vmax.f32 %v22, 2.8
    %v27 = vmax.f32 %v23, 2.8
    %v28 = vmax.f32 %v24, 2.8
    %v29 = vmin.f32 %v25, 3.0
    %v30 = vmin.f32 %v26, 3.0
    %v31 = vmin.f32 %v27, 3.0
    %v32 = vmin.f32 %v28, 3.0
    %v33 = vsub.f32 %v29, 2.8
    %v34 = vsub.f32 %v30, 2.8
    %v35 = vsub.f32 %v31, 2.8
    %v36 = vsub.f32 %v32, 2.8
    %v37 = vmul.f32 %v33, 15.707963
    %v38 = vmul.f32 %v34, 15.707963
    %v39 = vmul.f32 %v35, 15.707963
    %v40 = vmul.f32 %v36, 15.707963
    %v41 = vand.u32 2147483647, %v37
    %vm42 = vcmp.le.f32.partialorder %v41, 0.7853982
    %vm43 = vcmp.lt.s32.totalorder %v37, 0
    %v44 = vand.u32 %v37, 2139095040
    %v45 = vshrl.u32 %v44, 23
    %v46 = vsub.s32 %v45, 127
    %v47 = vand.u32 2147483647, %v37
    %v48 = vand.u32 %v47, 8388607
    %v49 = vor.u32 %v48, 8388608
    %v50 = vsub.s32 0, %v49
    %v51 = vadd.s32 %v46, 1
    %vm52 = vcmp.gt.s32.totalorder %v51, 0
    %v53 = vsel %vm52, %v51, 0
    %v54 = vshrl.u32 %v53, 5
    %v55 = vand.u32 %v53, 31
    %v56 = vsub.s32 32, %v55
    %v57 = vshrl.u32 683565275, %v56
    %v58 = vshll.u32 683565275, %v55
    %v59 = vshrl.u32 2475754826, %v56
    %v60 = vor.u32 %v58, %v59
    %v61 = vshll.u32 2475754826, %v55
    %v62 = vshrl.u32 2131351028, %v56
    %v63 = vor.u32 %v61, %v62
    %v64 = vshll.u32 2131351028, %v55
    %v65 = vshrl.u32 2102212464, %v56
    %v66 = vor.u32 %v64, %v65
    %v67 = vshll.u32 2102212464, %v55
    %v68 = vshrl.u32 920167782, %v56
    %v69 = vor.u32 %v67, %v68
    %v70 = vshll.u32 920167782, %v55
    %v71 = vshrl.u32 1326507024, %v56
    %v72 = vor.u32 %v70, %v71
    %vm73 = vcmp.lt.s32.totalorder %v54, 1
    %vm74 = vcmp.lt.s32.totalorder %v54, 2
    %vm75 = vcmp.lt.s32.totalorder %v54, 3
    %vm76 = vcmp.lt.s32.totalorder %v54, 4
    %v77 = vsel %vm73, %v57, %v60
    %v78 = vsel %vm76, %v66, 2102212464
    %v79 = vsel %vm75, %v63, %v78
    %v80 = vsel %vm74, %v77, %v79
    %v81 = vsel %vm73, %v60, %v63
    %v82 = vsel %vm76, %v69, 920167782
    %v83 = vsel %vm75, %v66, %v82
    %v84 = vsel %vm74, %v81, %v83
    %v85 = vsel %vm73, %v63, %v66
    %v86 = vsel %vm76, %v72, 1326507024
    %v87 = vsel %vm75, %v69, %v86
    %v88 = vsel %vm74, %v85, %v87
    %v89 = vshll.u32 %v49, 8
    %v90 = vmul.u32.u64.compose %v89, %v88
    %v91 = vextract.low.u32 %v90
    %v92 = vextract.high.u32 %v90
    %v93 = vmul.u32.u64.compose %v89, %v84
    %v94 = vextract.low.u32 %v93
    %v95 = vextract.high.u32 %v93
    %v96 = vmul.u32 %v89, %v80
    %v97 = vadd.s32 %v92, %v94
    %vm98 = vc.u32 %v92, %v94
    %v99 = vadd.s32 %v95, 1
    %v100 = vsel %vm98, %v99, %v95
    %v101 = vadd.s32 %v96, %v100
    %v102 = vadd.s32 %v101, 536870912
    %v103 = vshrl.u32 %v102, 30
    %v104 = vshll.u32 %v103, 30
    %v105 = vsub.s32 %v101, %v104
    %vm106 = vcmp.lt.s32.totalorder %v105, 0
    %v107 = vsub.s32 0, %v105
    %v108 = vsel %vm106, %v107, %v105
    %v109 = vclz %v108
    %v110 = vsub.s32 %v109, 2
    %vm111 = vcmp.gt.s32.totalorder 0, %v110
    %v112 = vsel %vm111, 0, %v110
    %v113 = vsub.s32 32, %v112
    %v114 = vshll.u32 %v105, %v112
    %v115 = vshrl.u32 %v97, %v113
    %v116 = vor.u32 %v114, %v115
    %v117 = vsub.s32 4294967266, %v112
    %v118 = vadd.s32 %v117, 127
    %v119 = vshll.u32 %v118, 23
    %v120 = vor.u32 4788187, %v119
    %v121 = vand.u32 2147483647, %v120
    %v123 = vcvt.s32.f32 %v116
    %v124 = vmul.f32 %v123, %v121
    %v125 = vxor.u32 %v124, 2147483648
    %v126 = vsel %vm43, %v125, %v124
    %v127 = vsub.s32 4, %v103
    %v128 = vsel %vm43, %v127, %v103
    %v129 = vsel %vm42, %v37, %v126
    %v130 = vsel %vm42, 0, %v128
    %v131 = vcosq.f32.pop %v129
    %v132 = vsinq.f32.pop %v129
    %vm133 = vweird.f32 %v37
    %v134 = vand.u32 %v130, 3
    %vm135 = vcmp.lt.s32.totalorder %v134, 2
    %vm136 = vcmp.eq.s32.totalorder %v134, 0
    %v137 = vxor.u32 %v132, 2147483648
    %v138 = vsel %vm136, %v131, %v137
    %vm139 = vcmp.eq.s32.totalorder %v134, 2
    %v140 = vxor.u32 %v131, 2147483648
    %v141 = vsel %vm139, %v140, %v132
    %v142 = vsel %vm135, %v138, %v141
    %v143 = vsel %vm133, nan, %v142
    %v144 = vand.u32 2147483647, %v38
    %vm145 = vcmp.le.f32.partialorder %v144, 0.7853982
    %vm146 = vcmp.lt.s32.totalorder %v38, 0
    %v147 = vand.u32 %v38, 2139095040
    %v148 = vshrl.u32 %v147, 23
    %v149 = vsub.s32 %v148, 127
    %v150 = vand.u32 2147483647, %v38
    %v151 = vand.u32 %v150, 8388607
    %v152 = vor.u32 %v151, 8388608
    %v153 = vsub.s32 0, %v152
    %v154 = vadd.s32 %v149, 1
    %vm155 = vcmp.gt.s32.totalorder %v154, 0
    %v156 = vsel %vm155, %v154, 0
    %v157 = vshrl.u32 %v156, 5
    %v158 = vand.u32 %v156, 31
    %v159 = vsub.s32 32, %v158
    %v160 = vshrl.u32 683565275, %v159
    %v161 = vshll.u32 683565275, %v158
    %v162 = vshrl.u32 2475754826, %v159
    %v163 = vor.u32 %v161, %v162
    %v164 = vshll.u32 2475754826, %v158
    %v165 = vshrl.u32 2131351028, %v159
    %v166 = vor.u32 %v164, %v165
    %v167 = vshll.u32 2131351028, %v158
    %v168 = vshrl.u32 2102212464, %v159
    %v169 = vor.u32 %v167, %v168
    %v170 = vshll.u32 2102212464, %v158
    %v171 = vshrl.u32 920167782, %v159
    %v172 = vor.u32 %v170, %v171
    %v173 = vshll.u32 920167782, %v158
    %v174 = vshrl.u32 1326507024, %v159
    %v175 = vor.u32 %v173, %v174
    %vm176 = vcmp.lt.s32.totalorder %v157, 1
    %vm177 = vcmp.lt.s32.totalorder %v157, 2
    %vm178 = vcmp.lt.s32.totalorder %v157, 3
    %vm179 = vcmp.lt.s32.totalorder %v157, 4
    %v180 = vsel %vm176, %v160, %v163
    %v181 = vsel %vm179, %v169, 2102212464
    %v182 = vsel %vm178, %v166, %v181
    %v183 = vsel %vm177, %v180, %v182
    %v184 = vsel %vm176, %v163, %v166
    %v185 = vsel %vm179, %v172, 920167782
    %v186 = vsel %vm178, %v169, %v185
    %v187 = vsel %vm177, %v184, %v186
    %v188 = vsel %vm176, %v166, %v169
    %v189 = vsel %vm179, %v175, 1326507024
    %v190 = vsel %vm178, %v172, %v189
    %v191 = vsel %vm177, %v188, %v190
    %v192 = vshll.u32 %v152, 8
    %v193 = vmul.u32.u64.compose %v192, %v191
    %v194 = vextract.low.u32 %v193
    %v195 = vextract.high.u32 %v193
    %v196 = vmul.u32.u64.compose %v192, %v187
    %v197 = vextract.low.u32 %v196
    %v198 = vextract.high.u32 %v196
    %v199 = vmul.u32 %v192, %v183
    %v200 = vadd.s32 %v195, %v197
    %vm201 = vc.u32 %v195, %v197
    %v202 = vadd.s32 %v198, 1
    %v203 = vsel %vm201, %v202, %v198
    %v204 = vadd.s32 %v199, %v203
    %v205 = vadd.s32 %v204, 536870912
    %v206 = vshrl.u32 %v205, 30
    %v207 = vshll.u32 %v206, 30
    %v208 = vsub.s32 %v204, %v207
    %vm209 = vcmp.lt.s32.totalorder %v208, 0
    %v210 = vsub.s32 0, %v208
    %v211 = vsel %vm209, %v210, %v208
    %v212 = vclz %v211
    %v213 = vsub.s32 %v212, 2
    %vm214 = vcmp.gt.s32.totalorder 0, %v213
    %v215 = vsel %vm214, 0, %v213
    %v216 = vsub.s32 32, %v215
    %v217 = vshll.u32 %v208, %v215
    %v218 = vshrl.u32 %v200, %v216
    %v219 = vor.u32 %v217, %v218
    %v220 = vsub.s32 4294967266, %v215
    %v221 = vadd.s32 %v220, 127
    %v222 = vshll.u32 %v221, 23
    %v223 = vor.u32 4788187, %v222
    %v224 = vand.u32 2147483647, %v223
    %v226 = vcvt.s32.f32 %v219
    %v227 = vmul.f32 %v226, %v224
    %v228 = vxor.u32 %v227, 2147483648
    %v229 = vsel %vm146, %v228, %v227
    %v230 = vsub.s32 4, %v206
    %v231 = vsel %vm146, %v230, %v206
    %v232 = vsel %vm145, %v38, %v229
    %v233 = vsel %vm145, 0, %v231
    %v234 = vcosq.f32.pop %v232
    %v235 = vsinq.f32.pop %v232
    %vm236 = vweird.f32 %v38
    %v237 = vand.u32 %v233, 3
    %vm238 = vcmp.lt.s32.totalorder %v237, 2
    %vm239 = vcmp.eq.s32.totalorder %v237, 0
    %v240 = vxor.u32 %v235, 2147483648
    %v241 = vsel %vm239, %v234, %v240
    %vm242 = vcmp.eq.s32.totalorder %v237, 2
    %v243 = vxor.u32 %v234, 2147483648
    %v244 = vsel %vm242, %v243, %v235
    %v245 = vsel %vm238, %v241, %v244
    %v246 = vsel %vm236, nan, %v245
    %v247 = vand.u32 2147483647, %v39
    %vm248 = vcmp.le.f32.partialorder %v247, 0.7853982
    %vm249 = vcmp.lt.s32.totalorder %v39, 0
    %v250 = vand.u32 %v39, 2139095040
    %v251 = vshrl.u32 %v250, 23
    %v252 = vsub.s32 %v251, 127
    %v253 = vand.u32 2147483647, %v39
    %v254 = vand.u32 %v253, 8388607
    %v255 = vor.u32 %v254, 8388608
    %v256 = vsub.s32 0, %v255
    %v257 = vadd.s32 %v252, 1
    %vm258 = vcmp.gt.s32.totalorder %v257, 0
    %v259 = vsel %vm258, %v257, 0
    %v260 = vshrl.u32 %v259, 5
    %v261 = vand.u32 %v259, 31
    %v262 = vsub.s32 32, %v261
    %v263 = vshrl.u32 683565275, %v262
    %v264 = vshll.u32 683565275, %v261
    %v265 = vshrl.u32 2475754826, %v262
    %v266 = vor.u32 %v264, %v265
    %v267 = vshll.u32 2475754826, %v261
    %v268 = vshrl.u32 2131351028, %v262
    %v269 = vor.u32 %v267, %v268
    %v270 = vshll.u32 2131351028, %v261
    %v271 = vshrl.u32 2102212464, %v262
    %v272 = vor.u32 %v270, %v271
    %v273 = vshll.u32 2102212464, %v261
    %v274 = vshrl.u32 920167782, %v262
    %v275 = vor.u32 %v273, %v274
    %v276 = vshll.u32 920167782, %v261
    %v277 = vshrl.u32 1326507024, %v262
    %v278 = vor.u32 %v276, %v277
    %vm279 = vcmp.lt.s32.totalorder %v260, 1
    %vm280 = vcmp.lt.s32.totalorder %v260, 2
    %vm281 = vcmp.lt.s32.totalorder %v260, 3
    %vm282 = vcmp.lt.s32.totalorder %v260, 4
    %v283 = vsel %vm279, %v263, %v266
    %v284 = vsel %vm282, %v272, 2102212464
    %v285 = vsel %vm281, %v269, %v284
    %v286 = vsel %vm280, %v283, %v285
    %v287 = vsel %vm279, %v266, %v269
    %v288 = vsel %vm282, %v275, 920167782
    %v289 = vsel %vm281, %v272, %v288
    %v290 = vsel %vm280, %v287, %v289
    %v291 = vsel %vm279, %v269, %v272
    %v292 = vsel %vm282, %v278, 1326507024
    %v293 = vsel %vm281, %v275, %v292
    %v294 = vsel %vm280, %v291, %v293
    %v295 = vshll.u32 %v255, 8
    %v296 = vmul.u32.u64.compose %v295, %v294
    %v297 = vextract.low.u32 %v296
    %v298 = vextract.high.u32 %v296
    %v299 = vmul.u32.u64.compose %v295, %v290
    %v300 = vextract.low.u32 %v299
    %v301 = vextract.high.u32 %v299
    %v302 = vmul.u32 %v295, %v286
    %v303 = vadd.s32 %v298, %v300
    %vm304 = vc.u32 %v298, %v300
    %v305 = vadd.s32 %v301, 1
    %v306 = vsel %vm304, %v305, %v301
    %v307 = vadd.s32 %v302, %v306
    %v308 = vadd.s32 %v307, 536870912
    %v309 = vshrl.u32 %v308, 30
    %v310 = vshll.u32 %v309, 30
    %v311 = vsub.s32 %v307, %v310
    %vm312 = vcmp.lt.s32.totalorder %v311, 0
    %v313 = vsub.s32 0, %v311
    %v314 = vsel %vm312, %v313, %v311
    %v315 = vclz %v314
    %v316 = vsub.s32 %v315, 2
    %vm317 = vcmp.gt.s32.totalorder 0, %v316
    %v318 = vsel %vm317, 0, %v316
    %v319 = vsub.s32 32, %v318
    %v320 = vshll.u32 %v311, %v318
    %v321 = vshrl.u32 %v303, %v319
    %v322 = vor.u32 %v320, %v321
    %v323 = vsub.s32 4294967266, %v318
    %v324 = vadd.s32 %v323, 127
    %v325 = vshll.u32 %v324, 23
    %v326 = vor.u32 4788187, %v325
    %v327 = vand.u32 2147483647, %v326
    %v329 = vcvt.s32.f32 %v322
    %v330 = vmul.f32 %v329, %v327
    %v331 = vxor.u32 %v330, 2147483648
    %v332 = vsel %vm249, %v331, %v330
    %v333 = vsub.s32 4, %v309
    %v334 = vsel %vm249, %v333, %v309
    %v335 = vsel %vm248, %v39, %v332
    %v336 = vsel %vm248, 0, %v334
    %v337 = vcosq.f32.pop %v335
    %v338 = vsinq.f32.pop %v335
    %vm339 = vweird.f32 %v39
    %v340 = vand.u32 %v336, 3
    %vm341 = vcmp.lt.s32.totalorder %v340, 2
    %vm342 = vcmp.eq.s32.totalorder %v340, 0
    %v343 = vxor.u32 %v338, 2147483648
    %v344 = vsel %vm342, %v337, %v343
    %vm345 = vcmp.eq.s32.totalorder %v340, 2
    %v346 = vxor.u32 %v337, 2147483648
    %v347 = vsel %vm345, %v346, %v338
    %v348 = vsel %vm341, %v344, %v347
    %v349 = vsel %vm339, nan, %v348
    %v350 = vand.u32 2147483647, %v40
    %vm351 = vcmp.le.f32.partialorder %v350, 0.7853982
    %vm352 = vcmp.lt.s32.totalorder %v40, 0
    %v353 = vand.u32 %v40, 2139095040
    %v354 = vshrl.u32 %v353, 23
    %v355 = vsub.s32 %v354, 127
    %v356 = vand.u32 2147483647, %v40
    %v357 = vand.u32 %v356, 8388607
    %v358 = vor.u32 %v357, 8388608
    %v359 = vsub.s32 0, %v358
    %v360 = vadd.s32 %v355, 1
    %vm361 = vcmp.gt.s32.totalorder %v360, 0
    %v362 = vsel %vm361, %v360, 0
    %v363 = vshrl.u32 %v362, 5
    %v364 = vand.u32 %v362, 31
    %v365 = vsub.s32 32, %v364
    %v366 = vshrl.u32 683565275, %v365
    %v367 = vshll.u32 683565275, %v364
    %v368 = vshrl.u32 2475754826, %v365
    %v369 = vor.u32 %v367, %v368
    %v370 = vshll.u32 2475754826, %v364
    %v371 = vshrl.u32 2131351028, %v365
    %v372 = vor.u32 %v370, %v371
    %v373 = vshll.u32 2131351028, %v364
    %v374 = vshrl.u32 2102212464, %v365
    %v375 = vor.u32 %v373, %v374
    %v376 = vshll.u32 2102212464, %v364
    %v377 = vshrl.u32 920167782, %v365
    %v378 = vor.u32 %v376, %v377
    %v379 = vshll.u32 920167782, %v364
    %v380 = vshrl.u32 1326507024, %v365
    %v381 = vor.u32 %v379, %v380
    %vm382 = vcmp.lt.s32.totalorder %v363, 1
    %vm383 = vcmp.lt.s32.totalorder %v363, 2
    %vm384 = vcmp.lt.s32.totalorder %v363, 3
    %vm385 = vcmp.lt.s32.totalorder %v363, 4
    %v386 = vsel %vm382, %v366, %v369
    %v387 = vsel %vm385, %v375, 2102212464
    %v388 = vsel %vm384, %v372, %v387
    %v389 = vsel %vm383, %v386, %v388
    %v390 = vsel %vm382, %v369, %v372
    %v391 = vsel %vm385, %v378, 920167782
    %v392 = vsel %vm384, %v375, %v391
    %v393 = vsel %vm383, %v390, %v392
    %v394 = vsel %vm382, %v372, %v375
    %v395 = vsel %vm385, %v381, 1326507024
    %v396 = vsel %vm384, %v378, %v395
    %v397 = vsel %vm383, %v394, %v396
    %v398 = vshll.u32 %v358, 8
    %v399 = vmul.u32.u64.compose %v398, %v397
    %v400 = vextract.low.u32 %v399
    %v401 = vextract.high.u32 %v399
    %v402 = vmul.u32.u64.compose %v398, %v393
    %v403 = vextract.low.u32 %v402
    %v404 = vextract.high.u32 %v402
    %v405 = vmul.u32 %v398, %v389
    %v406 = vadd.s32 %v401, %v403
    %vm407 = vc.u32 %v401, %v403
    %v408 = vadd.s32 %v404, 1
    %v409 = vsel %vm407, %v408, %v404
    %v410 = vadd.s32 %v405, %v409
    %v411 = vadd.s32 %v410, 536870912
    %v412 = vshrl.u32 %v411, 30
    %v413 = vshll.u32 %v412, 30
    %v414 = vsub.s32 %v410, %v413
    %vm415 = vcmp.lt.s32.totalorder %v414, 0
    %v416 = vsub.s32 0, %v414
    %v417 = vsel %vm415, %v416, %v414
    %v418 = vclz %v417
    %v419 = vsub.s32 %v418, 2
    %vm420 = vcmp.gt.s32.totalorder 0, %v419
    %v421 = vsel %vm420, 0, %v419
    %v422 = vsub.s32 32, %v421
    %v423 = vshll.u32 %v414, %v421
    %v424 = vshrl.u32 %v406, %v422
    %v425 = vor.u32 %v423, %v424
    %v426 = vsub.s32 4294967266, %v421
    %v427 = vadd.s32 %v426, 127
    %v428 = vshll.u32 %v427, 23
    %v429 = vor.u32 4788187, %v428
    %v430 = vand.u32 2147483647, %v429
    %v432 = vcvt.s32.f32 %v425
    %v433 = vmul.f32 %v432, %v430
    %v434 = vxor.u32 %v433, 2147483648
    %v435 = vsel %vm352, %v434, %v433
    %v436 = vsub.s32 4, %v412
    %v437 = vsel %vm352, %v436, %v412
    %v438 = vsel %vm351, %v40, %v435
    %v439 = vsel %vm351, 0, %v437
    %v440 = vcosq.f32.pop %v438
    %v441 = vsinq.f32.pop %v438
    %vm442 = vweird.f32 %v40
    %v443 = vand.u32 %v439, 3
    %vm444 = vcmp.lt.s32.totalorder %v443, 2
    %vm445 = vcmp.eq.s32.totalorder %v443, 0
    %v446 = vxor.u32 %v441, 2147483648
    %v447 = vsel %vm445, %v440, %v446
    %vm448 = vcmp.eq.s32.totalorder %v443, 2
    %v449 = vxor.u32 %v440, 2147483648
    %v450 = vsel %vm448, %v449, %v441
    %v451 = vsel %vm444, %v447, %v450
    %v452 = vsel %vm442, nan, %v451
    %v453 = vadd.f32 %v143, 1.0
    %v454 = vadd.f32 %v246, 1.0
    %v455 = vadd.f32 %v349, 1.0
    %v456 = vadd.f32 %v452, 1.0
    %v457 = vmul.f32 %v453, 0.5
    %v458 = vmul.f32 %v454, 0.5
    %v459 = vmul.f32 %v455, 0.5
    %v460 = vmul.f32 %v456, 0.5
    %v461 = vrcp.pop %v21
    %v462 = vrcp.pop %v22
    %v463 = vrcp.pop %v23
    %v464 = vrcp.pop %v24
    %v465 = vmul.f32 %v457, %v461
    %v466 = vmul.f32 %v458, %v462
    %v467 = vmul.f32 %v459, %v463
    %v468 = vmul.f32 %v460, %v464
    %469 = vst [vmem:[#allocation5] sm:$0xff] %v465
    %470 = vst [vmem:[#allocation5 + $0x8] sm:$0xff] %v466
    %471 = vst [vmem:[#allocation5 + $0x10] sm:$0xff] %v467
    %472 = vst [vmem:[#allocation5 + $0x18] sm:$0xff] %v468
    // Predicated region
    $region10: #{tpu_custom_call.1} parent=1 // pred_check
      _
    $region11: #{tpu_custom_call.1} parent=1 // pred_check_branch
      %474 = sbr.rel (0) target = $region13
    $region12: #{tpu_custom_call.1} parent=1 // pred_region
      %s476 = ssub.s32 512, 512
      %477 = vsyncadd [#allocation4], %s476
      %s479 = sshll.u32 [#allocation5], 4
      %s480 = int_to_ptr.vmem [resolvable:$true] %s479
      %482 = dma.vmem_to_hbm [thread:$0]  %s480, 512, %s1, [#allocation4]
    $region13: #{tpu_custom_call.1} parent=1 // pred_fallthru
      _
    // Predicated region
    $region14: #{tpu_custom_call.1} parent=1 // pred_check
      _
    $region15: #{tpu_custom_call.1} parent=1 // pred_check_branch
      %484 = sbr.rel (0) target = $region17
    $region16: #{tpu_custom_call.1} parent=1 // pred_region
      %485 = dma.done [#allocation4], 512
    $region17: #{tpu_custom_call.1} parent=1 // pred_fallthru
      _
    %486 = vsyncpa [#allocation3], 1
    %487 = vsyncpa [#allocation4], 1

</llo_original>
